<compile_context>
chip_gen: v6e
topology: v6e:2x2x1
jax: 0.10.0
libtpu: 0.0.40
codegen_flags: <defaults>
</compile_context>

<pallas_src>
import functools

import jax
import jax.numpy as jnp
from jax.experimental import pallas as pl
from jax.experimental.pallas import tpu as pltpu


def _concat_pool_kernel(x_ref, avg_ref, max_ref, *, sz, kw, inv):
    """One grid step processes `tb` (N*C) rows.

    x_ref:   (tb*sz, kh, W)  -- row r is output-row i = r % sz of plane r // sz
    avg_ref: (tb*sz, sz)     -- avg pooled values, column j = output col j
    max_ref: (tb*sz, sz)
    """
    x = x_ref[...].astype(jnp.float32)        # single cast shared by sum and max
    s_rows = jnp.sum(x, axis=1)               # (tb*sz, W) sublane reduce over kh
    m_rows = jnp.max(x, axis=1)               # (tb*sz, W)

    # sz is small (1..7 typical) -> static unrolled loop over output columns.
    avg_cols = []
    max_cols = []
    for j in range(sz):
        seg_s = s_rows[:, j * kw:(j + 1) * kw]                       # lane slice
        seg_m = m_rows[:, j * kw:(j + 1) * kw]
        avg_cols.append(jnp.sum(seg_s, axis=1, keepdims=True) * inv)  # (tb*sz, 1)
        max_cols.append(jnp.max(seg_m, axis=1, keepdims=True))        # (tb*sz, 1)

    # Accumulate then store once per output (no per-window masked partial stores).
    avg_ref[...] = jnp.concatenate(avg_cols, axis=1).astype(avg_ref.dtype)
    max_ref[...] = jnp.concatenate(max_cols, axis=1).astype(max_ref.dtype)


def _pick_row_tile(nc, sz, h, w):
    """Rows of (N*C) per grid step.

    Constraints: tb divides nc; (tb*sz) % 8 == 0 (aligned second-minor block dim)
    or tb == nc (full-extent block). Preferences: f32 working copy of one block
    <= ~2 MiB (fits v5e's 16 MiB scoped VMEM with double buffering to spare) and
    at least 2 grid steps so the pipeline overlaps DMA and v7x can megacore-shard.
    """
    cap = max(1, (2 * 1024 * 1024) // (h * w * 4))
    if nc >= 2:
        cap = max(1, min(cap, nc // 2))
    for tb in range(min(nc, cap), 0, -1):
        if nc % tb == 0 and (tb * sz) % 8 == 0:
            return tb
    return nc  # fallback: single block (block dims equal full array dims)


def concat_pool_2d(x_nchw, sz):
    """ConcatPool2d forward. x_nchw: (N, C, H, W) -> (N, 2*C, sz, sz)."""
    n, c, h, w = x_nchw.shape
    assert h % sz == 0 and w % sz == 0, "H, W must be divisible by sz"
    # TODO(synk): non-divisible adaptive pooling (ragged windows) not implemented;
    # for H % sz == 0 and W % sz == 0 adaptive pooling == uniform pooling exactly.
    kh, kw = h // sz, w // sz
    nc = n * c

    # Free contiguous reshape of the NCHW buffer (no transpose, no extra HBM pass).
    x3 = x_nchw.reshape(nc * sz, kh, w)

    tb = _pick_row_tile(nc, sz, h, w)
    grid = (nc // tb,)

    kernel = functools.partial(
        _concat_pool_kernel, sz=sz, kw=kw, inv=1.0 / float(kh * kw))

    avg, mx = pl.pallas_call(
        kernel,
        out_shape=(
            jax.ShapeDtypeStruct((nc * sz, sz), x_nchw.dtype),
            jax.ShapeDtypeStruct((nc * sz, sz), x_nchw.dtype),
        ),
        grid=grid,
        in_specs=[
            pl.BlockSpec((tb * sz, kh, w), lambda b: (b, 0, 0)),
        ],
        out_specs=(
            pl.BlockSpec((tb * sz, sz), lambda b: (b, 0)),
            pl.BlockSpec((tb * sz, sz), lambda b: (b, 0)),
        ),
        compiler_params=pltpu.CompilerParams(dimension_semantics=("parallel",)),
    )(x3)

    # Tiny outputs: free reshapes + one small concat on the channel dim.
    avg = avg.reshape(n, c, sz, sz)
    mx = mx.reshape(n, c, sz, sz)
    return jnp.concatenate([avg, mx], axis=1)  # (N, 2C, sz, sz)


def concat_pool_2d_ref(x, sz):
    """Pure-JAX reference (matches PyTorch semantics for divisible sizes)."""
    n, c, h, w = x.shape
    kh, kw = h // sz, w // sz
    xr = x.reshape(n, c, sz, kh, sz, kw)
    avg = xr.mean(axis=(3, 5))
    mx = xr.max(axis=(3, 5))
    return jnp.concatenate([avg, mx], axis=1)


if __name__ == "__main__":
    key = jax.random.PRNGKey(0)
    x = jax.random.normal(key, (2, 4, 16, 16), dtype=jnp.float32)  # NCHW
    sz = 2

    out = concat_pool_2d(x, sz)
    out = jax.block_until_ready(out)

    ref = concat_pool_2d_ref(x, sz)
    assert out.shape == (2, 2 * 4, sz, sz), out.shape
    assert jnp.allclose(out, ref, atol=1e-5, rtol=1e-5), "mismatch vs reference"

    print("KERNEL_OK")
</pallas_src>

<mosaic_0001>
module attributes {stable_mosaic.version = 11 : i64} {
  func.func @_concat_pool_kernel(%arg0: i32, %arg1: memref<8x8x16xf32, #tpu.memory_space<vmem>>, %arg2: memref<8x2xf32, #tpu.memory_space<vmem>>, %arg3: memref<8x2xf32, #tpu.memory_space<vmem>>) attributes {dimension_semantics = [#tpu.dimension_semantics<parallel>], iteration_bounds = array<i64: 2>, scalar_prefetch = 0 : i64, scratch_operands = 0 : i64, tpu.core_type = #tpu.core_type<tc>, window_params = [{transform_indices = @transform_0, window_bounds = array<i64: 8, 8, 16>}, {transform_indices = @transform_1, window_bounds = array<i64: 8, 2>}, {transform_indices = @transform_2, window_bounds = array<i64: 8, 2>}]} {
    %c0 = arith.constant 0 : index
    %c0_0 = arith.constant 0 : index
    %c0_1 = arith.constant 0 : index
    %0 = vector.load %arg1[%c0, %c0_0, %c0_1] : memref<8x8x16xf32, #tpu.memory_space<vmem>>, vector<8x8x16xf32>
    %cst = arith.constant dense<0.000000e+00> : vector<8x16xf32>
    %1 = vector.multi_reduction <add>, %0, %cst [1] : vector<8x8x16xf32> to vector<8x16xf32>
    %cst_2 = arith.constant dense<0xFF800000> : vector<8x16xf32>
    %2 = vector.multi_reduction <maximumf>, %0, %cst_2 [1] : vector<8x8x16xf32> to vector<8x16xf32>
    %3 = vector.extract_strided_slice %1 {offsets = [0, 0], sizes = [8, 8], strides = [1, 1]} : vector<8x16xf32> to vector<8x8xf32>
    %4 = vector.extract_strided_slice %2 {offsets = [0, 0], sizes = [8, 8], strides = [1, 1]} : vector<8x16xf32> to vector<8x8xf32>
    %cst_3 = arith.constant dense<0.000000e+00> : vector<8xf32>
    %5 = vector.multi_reduction <add>, %3, %cst_3 [1] : vector<8x8xf32> to vector<8xf32>
    %6 = vector.shape_cast %5 : vector<8xf32> to vector<8x1xf32>
    %cst_4 = arith.constant 1.562500e-02 : f32
    %7 = vector.broadcast %cst_4 : f32 to vector<8x1xf32>
    %8 = arith.mulf %6, %7 : vector<8x1xf32>
    %cst_5 = arith.constant dense<0xFF800000> : vector<8xf32>
    %9 = vector.multi_reduction <maximumf>, %4, %cst_5 [1] : vector<8x8xf32> to vector<8xf32>
    %10 = vector.shape_cast %9 : vector<8xf32> to vector<8x1xf32>
    %11 = vector.extract_strided_slice %1 {offsets = [0, 8], sizes = [8, 8], strides = [1, 1]} : vector<8x16xf32> to vector<8x8xf32>
    %12 = vector.extract_strided_slice %2 {offsets = [0, 8], sizes = [8, 8], strides = [1, 1]} : vector<8x16xf32> to vector<8x8xf32>
    %cst_6 = arith.constant dense<0.000000e+00> : vector<8xf32>
    %13 = vector.multi_reduction <add>, %11, %cst_6 [1] : vector<8x8xf32> to vector<8xf32>
    %14 = vector.shape_cast %13 : vector<8xf32> to vector<8x1xf32>
    %cst_7 = arith.constant 1.562500e-02 : f32
    %15 = vector.broadcast %cst_7 : f32 to vector<8x1xf32>
    %16 = arith.mulf %14, %15 : vector<8x1xf32>
    %cst_8 = arith.constant dense<0xFF800000> : vector<8xf32>
    %17 = vector.multi_reduction <maximumf>, %12, %cst_8 [1] : vector<8x8xf32> to vector<8xf32>
    %18 = vector.shape_cast %17 : vector<8xf32> to vector<8x1xf32>
    %19 = tpu.concatenate %8, %16 in 1 : vector<8x1xf32>, vector<8x1xf32> -> vector<8x2xf32>
    %c0_9 = arith.constant 0 : index
    %c0_10 = arith.constant 0 : index
    %20 = vector.load %arg2[%c0_9, %c0_10] : memref<8x2xf32, #tpu.memory_space<vmem>>, vector<8x2xf32>
    tpu.vector_store %arg2[%c0_9, %c0_10], %19 {strides = array<i32>} : memref<8x2xf32, #tpu.memory_space<vmem>>, vector<8x2xf32>,
    %21 = tpu.concatenate %10, %18 in 1 : vector<8x1xf32>, vector<8x1xf32> -> vector<8x2xf32>
    %c0_11 = arith.constant 0 : index
    %c0_12 = arith.constant 0 : index
    %22 = vector.load %arg3[%c0_11, %c0_12] : memref<8x2xf32, #tpu.memory_space<vmem>>, vector<8x2xf32>
    tpu.vector_store %arg3[%c0_11, %c0_12], %21 {strides = array<i32>} : memref<8x2xf32, #tpu.memory_space<vmem>>, vector<8x2xf32>,
    return
  }
  func.func @transform_0(%arg0: i32) -> (i32, i32, i32) {
    %c0_i32 = arith.constant 0 : i32
    %c0_i32_0 = arith.constant 0 : i32
    %c0_i32_1 = arith.constant 0 : i32
    return %arg0, %c0_i32, %c0_i32_0 : i32, i32, i32
  }
  func.func @transform_1(%arg0: i32) -> (i32, i32) {
    %c0_i32 = arith.constant 0 : i32
    %c0_i32_0 = arith.constant 0 : i32
    return %arg0, %c0_i32 : i32, i32
  }
  func.func @transform_2(%arg0: i32) -> (i32, i32) {
    %c0_i32 = arith.constant 0 : i32
    %c0_i32_0 = arith.constant 0 : i32
    return %arg0, %c0_i32 : i32, i32
  }
}

</mosaic_0001>

<llo_original>
// kernel: tpu_custom_call.1
$region0: #{tpu_custom_call.1}
  #allocation0 [shape = 'u32[]', space=smem, size = 0x4, offset = 0x4, fixed_abs, tag = 'smem constant byte address 0x4 - core index']
  #allocation1 [shape = 'u32[144,128]{1,0:T(1,128)}', space=vmem, size = 0x12000, scoped, tag = 'internal scratch']
  %s0 = inlined_call_operand.hbm [shape: f32[16,8,16], index: 0, kind: input, shape index: {}]
  %s1 = inlined_call_operand.vmem [shape: f32[16,2], index: 1, kind: output, shape index: {0}]
  %s2 = inlined_call_operand.vmem [shape: f32[16,2], index: 2, kind: output, shape index: {1}]
  %3 = xla_tuple %s1, %s2
  %s4 = sld [smem:[#allocation0]]
  $region49: #{tpu_custom_call.1} parent=0
    _
  %s6 = ssub.s32 1, %s4
  %s7 = scalar_select 0, %s6, %s4
  $region1: #{tpu_custom_call.1} parent=0
    #allocation2 [shape = 'u8[65536]{0}', space=vmem, size = 0x10000, scoped, tag = 'input window, operand 0']
    #allocation3 [shape = 's32[2]{0}', space=sflag, size = 0x8, scoped, tag = 'scoped memory for tpu_custom_call.1']
    %8 = vsyncpa [#allocation3], 0
    %s9 = scalar_lea.sflag [#allocation3], 1
    %10 = vsyncpa %s9, 0
    loop: start=0, step=1, limit=4
    $region2: #{tpu_custom_call.1} parent=1 // loop_pre_header
      _
    $region3: #{tpu_custom_call.1} parent=1 // loop_header
      %s12 = sphi 0, %s16
      %p13 = scmp.ge.s32.totalorder %s12, 4
      %s22 = sphi 0, %s24
      %s25 = sphi 0, %s22
      %s26 = sphi 0, %s25
      %s42 = sphi 0, %s26
      %s48 = sphi 0, %s50
      %s51 = sphi 0, %s48
      %s52 = sphi 0, %s51
      %s68 = sphi 0, %s52
      %s74 = sphi 0, %s76
      %s77 = sphi 0, %s74
      %s78 = sphi 0, %s77
      %s94 = sphi 0, %s78
    $region4: #{tpu_custom_call.1} parent=1 // loop_header_branch
      %15 = sbr.rel (%p13) target = $region8
    $region5: #{tpu_custom_call.1} parent=1 // loop_body
      %s17 = ssub.s32 %s12, 1
      %s18 = ssub.s32 %s12, 2
      %s19 = sadd.s32 %s12, 1
      %s20 = ssub.s32 %s12, %s19
      %p21 = scmp.eq.s32.totalorder %s20, 0
      %s23 = sadd.s32 %s22, 1
      %s24 = scalar_select %p21, %s22, %s23
      %p27 = pneg %p21
      %p28 = scmp.eq.s32.totalorder %s12, 1
      %p29 = por %p27, %p28
      %p30 = scmp.ne.s32.totalorder %s22, %s25
      %p31 = scmp.eq.s32.totalorder %s12, 0
      %p32 = por %p30, %p31
      %p33 = scmp.ne.s32.totalorder %s22, %s25
      %p34 = scmp.eq.s32.totalorder %s17, 1
      %p35 = por %p33, %p34
      %p36 = scmp.ne.s32.totalorder %s25, %s26
      %p37 = scmp.eq.s32.totalorder %s17, 0
      %p38 = por %p36, %p37
      %p39 = scmp.ne.s32.totalorder %s25, %s26
      %p40 = scmp.eq.s32.totalorder %s18, 1
      %p41 = por %p39, %p40
      %p43 = scmp.ne.s32.totalorder %s26, %s42
      %p44 = scmp.eq.s32.totalorder %s18, 0
      %p45 = por %p43, %p44
      %s46 = ssub.s32 %s12, %s19
      %p47 = scmp.eq.s32.totalorder %s46, 0
      %s49 = sadd.s32 %s48, 1
      %s50 = scalar_select %p47, %s48, %s49
      %p53 = pneg %p47
      %p54 = scmp.eq.s32.totalorder %s12, 1
      %p55 = por %p53, %p54
      %p56 = scmp.ne.s32.totalorder %s48, %s51
      %p57 = scmp.eq.s32.totalorder %s12, 0
      %p58 = por %p56, %p57
      %p59 = scmp.ne.s32.totalorder %s48, %s51
      %p60 = scmp.eq.s32.totalorder %s17, 1
      %p61 = por %p59, %p60
      %p62 = scmp.ne.s32.totalorder %s51, %s52
      %p63 = scmp.eq.s32.totalorder %s17, 0
      %p64 = por %p62, %p63
      %p65 = scmp.ne.s32.totalorder %s51, %s52
      %p66 = scmp.eq.s32.totalorder %s18, 1
      %p67 = por %p65, %p66
      %p69 = scmp.ne.s32.totalorder %s52, %s68
      %p70 = scmp.eq.s32.totalorder %s18, 0
      %p71 = por %p69, %p70
      %s72 = ssub.s32 %s12, %s19
      %p73 = scmp.eq.s32.totalorder %s72, 0
      %s75 = sadd.s32 %s74, 1
      %s76 = scalar_select %p73, %s74, %s75
      %p79 = pneg %p73
      %p80 = scmp.eq.s32.totalorder %s12, 1
      %p81 = por %p79, %p80
      %p82 = scmp.ne.s32.totalorder %s74, %s77
      %p83 = scmp.eq.s32.totalorder %s12, 0
      %p84 = por %p82, %p83
      %p85 = scmp.ne.s32.totalorder %s74, %s77
      %p86 = scmp.eq.s32.totalorder %s17, 1
      %p87 = por %p85, %p86
      %p88 = scmp.ne.s32.totalorder %s77, %s78
      %p89 = scmp.eq.s32.totalorder %s17, 0
      %p90 = por %p88, %p89
      %p91 = scmp.ne.s32.totalorder %s77, %s78
      %p92 = scmp.eq.s32.totalorder %s18, 1
      %p93 = por %p91, %p92
      %p95 = scmp.ne.s32.totalorder %s78, %s94
      %p96 = scmp.eq.s32.totalorder %s18, 0
      %p97 = por %p95, %p96
      %p98 = scmp.le.s32.totalorder 1, %s12
      %p99 = scmp.lt.s32.totalorder %s12, 3
      %p100 = pnand %p98, %p99
      %p101 = pneg %p100
      // Predicated region
      $region9: #{tpu_custom_call.1} parent=5 // pred_check
        _
      $region10: #{tpu_custom_call.1} parent=5 // pred_check_branch
        %103 = sbr.rel (%p100) target = $region12
      $region11: #{tpu_custom_call.1} parent=5 // pred_region
        %s104 = ssub.s32 %s12, 1
      $region12: #{tpu_custom_call.1} parent=5 // pred_fallthru
        _
      %p105 = scmp.lt.s32.totalorder %s12, 2
      // Predicated region
      $region13: #{tpu_custom_call.1} parent=5 // pred_check
        %p106 = pneg %p105
      $region14: #{tpu_custom_call.1} parent=5 // pred_check_branch
        %108 = sbr.rel (%p106) target = $region16
      $region15: #{tpu_custom_call.1} parent=5 // pred_region
        // Predicated region
        $region17: #{tpu_custom_call.1} parent=15 // pred_check
          %p109 = pneg %p32
        $region18: #{tpu_custom_call.1} parent=15 // pred_check_branch
          %111 = sbr.rel (%p109) target = $region20
        $region19: #{tpu_custom_call.1} parent=15 // pred_region
          %s112 = sand.u32 %s22, 1
          %s113 = scalar_lea.sflag [#allocation3], %s112
          %s114 = sand.u32 %s22, 1
          %s115 = smul.addr %s114, 64
          %s116 = scalar_lea.vmem [#allocation2], %s115
          %s117 = smul.u32 8, %s12
          %s119 = ssub.s32 1024, 1024
          %120 = vsyncadd %s113, %s119
          %s121 = smul.addr %s117, 128
          %s122 = scalar_lea.hbm %s0, %s121
          %s123 = sshll.u32 %s116, 4
          %s124 = int_to_ptr.vmem [resolvable:$true] %s123
          %129 = dma.hbm_to_vmem [thread:$0]  %s122, 1024, %s124, %s113, 128, 128, 8
        $region20: #{tpu_custom_call.1} parent=15 // pred_fallthru
          _
      $region16: #{tpu_custom_call.1} parent=5 // pred_fallthru
        _
      %p130 = scmp.le.s32.totalorder 1, %s12
      %p131 = scmp.lt.s32.totalorder %s12, 3
      %p132 = pnand %p130, %p131
      %p133 = pneg %p132
      // Predicated region
      $region21: #{tpu_custom_call.1} parent=5 // pred_check
        _
      $region22: #{tpu_custom_call.1} parent=5 // pred_check_branch
        %135 = sbr.rel (%p132) target = $region24
      $region23: #{tpu_custom_call.1} parent=5 // pred_region
        %s136 = ssub.s32 %s12, 1
        %s137 = sand.u32 %s25, 1
        %s138 = scalar_lea.sflag [#allocation3], %s137
        %s139 = sand.u32 %s25, 1
        %s140 = smul.addr %s139, 64
        %s141 = scalar_lea.vmem [#allocation2], %s140
        // Predicated region
        $region25: #{tpu_custom_call.1} parent=23 // pred_check
          %p142 = pneg %p38
        $region26: #{tpu_custom_call.1} parent=23 // pred_check_branch
          %144 = sbr.rel (%p142) target = $region28
        $region27: #{tpu_custom_call.1} parent=23 // pred_region
          %145 = dma.done %s138, 1024
        $region28: #{tpu_custom_call.1} parent=23 // pred_fallthru
          _
        %s146 = sand.u32 %s25, 1
        %s147 = scalar_lea.sflag [#allocation3], %s146
        %s148 = sand.u32 %s25, 1
        %s149 = smul.addr %s148, 64
        %s150 = scalar_lea.vmem [#allocation2], %s149
        %p151 = pneg %p38
        %p152 = pneg %p35
        %p153 = pneg %p64
        %p154 = pneg %p61
        %p155 = scmp.lt.s32.totalorder %s17, 1
        %s156 = scalar_select %p155, %s17, 1
        %s157 = smul.addr %s156, 8
        %s158 = scalar_lea.vmem %s1, %s157
        %p159 = pneg %p90
        %p160 = pneg %p87
        %p161 = scmp.lt.s32.totalorder %s17, 1
        %s162 = scalar_select %p161, %s17, 1
        %s163 = smul.addr %s162, 8
        %s164 = scalar_lea.vmem %s2, %s163
        %s165 = smul.u32 8, %s17
        %p166 = scmp.lt.s32.totalorder %s17, 1
        %s167 = scalar_select %p166, %s17, 1
        %s168 = smul.addr %s167, 8
        %s169 = scalar_lea.vmem %s1, %s168
        %p170 = scmp.lt.s32.totalorder %s17, 1
        %s171 = scalar_select %p170, %s17, 1
        %s172 = smul.addr %s171, 8
        %s173 = scalar_lea.vmem %s2, %s172
        %v174 = vld [vmem:[%s141] sm:$0xff]
        %v175 = vld [vmem:[%s141 + $0x8] sm:$0xff]
        %v176 = vld [vmem:[%s141 + $0x10] sm:$0xff]
        %v177 = vld [vmem:[%s141 + $0x18] sm:$0xff]
        %v178 = vld [vmem:[%s141 + $0x20] sm:$0xff]
        %v179 = vld [vmem:[%s141 + $0x28] sm:$0xff]
        %v180 = vld [vmem:[%s141 + $0x30] sm:$0xff]
        %v181 = vld [vmem:[%s141 + $0x38] sm:$0xff]
        %vm182 = vcmask 130048
        %v183 = vsel %vm182, %v174, 0.0
        %v184 = vrot.slane %v183, 4
        %v185 = vadd.f32 %v183, %v184
        %v186 = vrot.slane %v185, 2
        %v187 = vadd.f32 %v185, %v186
        %v188 = vrot.slane %v187, 1
        %v189 = vadd.f32 %v187, %v188
        %v190 = vsel %vm182, %v175, 0.0
        %v191 = vrot.slane %v190, 4
        %v192 = vadd.f32 %v190, %v191
        %v193 = vrot.slane %v192, 2
        %v194 = vadd.f32 %v192, %v193
        %v195 = vrot.slane %v194, 1
        %v196 = vadd.f32 %v194, %v195
        %v197 = vsel %vm182, %v176, 0.0
        %v198 = vrot.slane %v197, 4
        %v199 = vadd.f32 %v197, %v198
        %v200 = vrot.slane %v199, 2
        %v201 = vadd.f32 %v199, %v200
        %v202 = vrot.slane %v201, 1
        %v203 = vadd.f32 %v201, %v202
        %v204 = vsel %vm182, %v177, 0.0
        %v205 = vrot.slane %v204, 4
        %v206 = vadd.f32 %v204, %v205
        %v207 = vrot.slane %v206, 2
        %v208 = vadd.f32 %v206, %v207
        %v209 = vrot.slane %v208, 1
        %v210 = vadd.f32 %v208, %v209
        %v211 = vsel %vm182, %v178, 0.0
        %v212 = vrot.slane %v211, 4
        %v213 = vadd.f32 %v211, %v212
        %v214 = vrot.slane %v213, 2
        %v215 = vadd.f32 %v213, %v214
        %v216 = vrot.slane %v215, 1
        %v217 = vadd.f32 %v215, %v216
        %v218 = vsel %vm182, %v179, 0.0
        %v219 = vrot.slane %v218, 4
        %v220 = vadd.f32 %v218, %v219
        %v221 = vrot.slane %v220, 2
        %v222 = vadd.f32 %v220, %v221
        %v223 = vrot.slane %v222, 1
        %v224 = vadd.f32 %v222, %v223
        %v225 = vsel %vm182, %v180, 0.0
        %v226 = vrot.slane %v225, 4
        %v227 = vadd.f32 %v225, %v226
        %v228 = vrot.slane %v227, 2
        %v229 = vadd.f32 %v227, %v228
        %v230 = vrot.slane %v229, 1
        %v231 = vadd.f32 %v229, %v230
        %v232 = vsel %vm182, %v181, 0.0
        %v233 = vrot.slane %v232, 4
        %v234 = vadd.f32 %v232, %v233
        %v235 = vrot.slane %v234, 2
        %v236 = vadd.f32 %v234, %v235
        %v237 = vrot.slane %v236, 1
        %v238 = vadd.f32 %v236, %v237
        %v239 = vsel %vm182, %v174, -inf
        %v240 = vrot.slane %v239, 4
        %v241 = vmax.f32 %v239, %v240
        %v242 = vrot.slane %v241, 2
        %v243 = vmax.f32 %v241, %v242
        %v244 = vrot.slane %v243, 1
        %v245 = vmax.f32 %v243, %v244
        %v246 = vsel %vm182, %v175, -inf
        %v247 = vrot.slane %v246, 4
        %v248 = vmax.f32 %v246, %v247
        %v249 = vrot.slane %v248, 2
        %v250 = vmax.f32 %v248, %v249
        %v251 = vrot.slane %v250, 1
        %v252 = vmax.f32 %v250, %v251
        %v253 = vsel %vm182, %v176, -inf
        %v254 = vrot.slane %v253, 4
        %v255 = vmax.f32 %v253, %v254
        %v256 = vrot.slane %v255, 2
        %v257 = vmax.f32 %v255, %v256
        %v258 = vrot.slane %v257, 1
        %v259 = vmax.f32 %v257, %v258
        %v260 = vsel %vm182, %v177, -inf
        %v261 = vrot.slane %v260, 4
        %v262 = vmax.f32 %v260, %v261
        %v263 = vrot.slane %v262, 2
        %v264 = vmax.f32 %v262, %v263
        %v265 = vrot.slane %v264, 1
        %v266 = vmax.f32 %v264, %v265
        %v267 = vsel %vm182, %v178, -inf
        %v268 = vrot.slane %v267, 4
        %v269 = vmax.f32 %v267, %v268
        %v270 = vrot.slane %v269, 2
        %v271 = vmax.f32 %v269, %v270
        %v272 = vrot.slane %v271, 1
        %v273 = vmax.f32 %v271, %v272
        %v274 = vsel %vm182, %v179, -inf
        %v275 = vrot.slane %v274, 4
        %v276 = vmax.f32 %v274, %v275
        %v277 = vrot.slane %v276, 2
        %v278 = vmax.f32 %v276, %v277
        %v279 = vrot.slane %v278, 1
        %v280 = vmax.f32 %v278, %v279
        %v281 = vsel %vm182, %v180, -inf
        %v282 = vrot.slane %v281, 4
        %v283 = vmax.f32 %v281, %v282
        %v284 = vrot.slane %v283, 2
        %v285 = vmax.f32 %v283, %v284
        %v286 = vrot.slane %v285, 1
        %v287 = vmax.f32 %v285, %v286
        %v288 = vsel %vm182, %v181, -inf
        %v289 = vrot.slane %v288, 4
        %v290 = vmax.f32 %v288, %v289
        %v291 = vrot.slane %v290, 2
        %v292 = vmax.f32 %v290, %v291
        %v293 = vrot.slane %v292, 1
        %v294 = vmax.f32 %v292, %v293
        %vm303 = vcmask 1041409
        %v304 = vsel %vm303, %v196, %v189
        %vm305 = vcmask 1042434
        %v306 = vsel %vm305, %v203, %v304
        %vm307 = vcmask 1043459
        %v308 = vsel %vm307, %v210, %v306
        %vm309 = vcmask 1044484
        %v310 = vsel %vm309, %v217, %v308
        %vm311 = vcmask 1045509
        %v312 = vsel %vm311, %v224, %v310
        %vm313 = vcmask 1046534
        %v314 = vsel %vm313, %v231, %v312
        %vm315 = vcmask 1047559
        %v316 = vsel %vm315, %v238, %v314
        %vm318 = vcmask 64512
        %v319 = vsel %vm318, %v316, 0.0
        %320 = vadd.xlane.f32.xlu0 %v319
        %v321 = vpop.xlane.xlu0 %320
        %v322 = vmul.f32 %v321, 0.015625
        %v331 = vsel %vm303, %v252, %v245
        %v332 = vsel %vm305, %v259, %v331
        %v333 = vsel %vm307, %v266, %v332
        %v334 = vsel %vm309, %v273, %v333
        %v335 = vsel %vm311, %v280, %v334
        %v336 = vsel %vm313, %v287, %v335
        %v337 = vsel %vm315, %v294, %v336
        %v339 = vsel %vm318, %v337, -inf
        %340 = vmax.xlane.f32.xlu0 %v339
        %v341 = vpop.xlane.xlu0 %340
        %342 = vrot.lane.b32.xlu0 %v316, 120
        %v343 = vpop.permute.xlu0 %342
        %v345 = vsel %vm318, %v343, 0.0
        %346 = vadd.xlane.f32.xlu0 %v345
        %v347 = vpop.xlane.xlu0 %346
        %v348 = vmul.f32 %v347, 0.015625
        %vm349 = vcmask 130112
        %v350 = vsel %vm349, %v337, -inf
        %351 = vmax.xlane.f32.xlu0 %v350
        %v352 = vpop.xlane.xlu0 %351
        %vm353 = vcmask 7168
        %v354 = vsel %vm353, %v322, %v348
        %vm355 = vcmask 15360
        %356 = vst.msk [vmem:[%s169] sm:$0xff] %vm355, %v354
        %v357 = vsel %vm353, %v341, %v352
        %358 = vst.msk [vmem:[%s173] sm:$0xff] %vm355, %v357
        %p359 = scmp.lt.s32.totalorder %s17, 1
        %s360 = scalar_select %p359, %s17, 1
        %s361 = smul.addr %s360, 8
        %s362 = scalar_lea.vmem %s1, %s361
        %p363 = scmp.lt.s32.totalorder %s17, 1
        %s364 = scalar_select %p363, %s17, 1
        %s365 = smul.addr %s364, 8
        %s366 = scalar_lea.vmem %s2, %s365
        // Predicated region
        $region29: #{tpu_custom_call.1} parent=23 // pred_check
          %p367 = pneg %p61
        $region30: #{tpu_custom_call.1} parent=23 // pred_check_branch
          %369 = sbr.rel (%p367) target = $region32
        $region31: #{tpu_custom_call.1} parent=23 // pred_region
          _
        $region32: #{tpu_custom_call.1} parent=23 // pred_fallthru
          _
        // Predicated region
        $region33: #{tpu_custom_call.1} parent=23 // pred_check
          %p370 = pneg %p87
        $region34: #{tpu_custom_call.1} parent=23 // pred_check_branch
          %372 = sbr.rel (%p370) target = $region36
        $region35: #{tpu_custom_call.1} parent=23 // pred_region
          _
        $region36: #{tpu_custom_call.1} parent=23 // pred_fallthru
          _
      $region24: #{tpu_custom_call.1} parent=5 // pred_fallthru
        _
      %p373 = scmp.le.s32.totalorder 2, %s12
      // Predicated region
      $region37: #{tpu_custom_call.1} parent=5 // pred_check
        %p374 = pneg %p373
      $region38: #{tpu_custom_call.1} parent=5 // pred_check_branch
        %376 = sbr.rel (%p374) target = $region40
      $region39: #{tpu_custom_call.1} parent=5 // pred_region
        %s377 = ssub.s32 %s12, 2
        // Predicated region
        $region41: #{tpu_custom_call.1} parent=39 // pred_check
          %p378 = pneg %p67
        $region42: #{tpu_custom_call.1} parent=39 // pred_check_branch
          %380 = sbr.rel (%p378) target = $region44
        $region43: #{tpu_custom_call.1} parent=39 // pred_region
          %p381 = scmp.lt.s32.totalorder %s18, 1
          %s382 = scalar_select %p381, %s18, 1
          %s383 = smul.addr %s382, 8
          %s384 = scalar_lea.vmem %s1, %s383
        $region44: #{tpu_custom_call.1} parent=39 // pred_fallthru
          _
        // Predicated region
        $region45: #{tpu_custom_call.1} parent=39 // pred_check
          %p385 = pneg %p93
        $region46: #{tpu_custom_call.1} parent=39 // pred_check_branch
          %387 = sbr.rel (%p385) target = $region48
        $region47: #{tpu_custom_call.1} parent=39 // pred_region
          %p388 = scmp.lt.s32.totalorder %s18, 1
          %s389 = scalar_select %p388, %s18, 1
          %s390 = smul.addr %s389, 8
          %s391 = scalar_lea.vmem %s2, %s390
        $region48: #{tpu_custom_call.1} parent=39 // pred_fallthru
          _
      $region40: #{tpu_custom_call.1} parent=5 // pred_fallthru
        _
    $region6: #{tpu_custom_call.1} parent=1 // loop_footer
      %s16 = sadd.s32 1, %s12
    $region7: #{tpu_custom_call.1} parent=1 // loop_footer_branch
      %11 = sbr.rel target = $region3
    $region8: #{tpu_custom_call.1} parent=1 // loop_exit
      _
    %392 = vsyncpa [#allocation3], 1
    %s393 = scalar_lea.sflag [#allocation3], 1
    %394 = vsyncpa %s393, 1

</llo_original>
